<compile_context>
chip_gen: v7x
topology: tpu7x:2x2x1
jax: 0.10.0
libtpu: 0.0.40
codegen_flags: <defaults>
</compile_context>

<pallas_src>
import jax
import jax.numpy as jnp
from jax.experimental import pallas as pl
from jax.experimental.pallas import tpu as pltpu


def _round_up(x, m):
    return (x + m - 1) // m * m


def _make_kernel(h1, h2, h3):
    """Fused MLP kernel for static hidden sizes (h1, h2, h3-padded)."""

    def kernel(x_ref, w1_ref, w2_ref, w3_ref, w4_ref, b_ref, b4_ref, out_ref):
        # Cast the f32 batch tile to bf16 in-kernel (no separate XLA pass on x).
        x = x_ref[...].astype(jnp.bfloat16)                         # (TB, d_in)

        # Layer 1 (BatchNorm folded into w1 / bias in the wrapper).
        h = jnp.dot(x, w1_ref[...], preferred_element_type=jnp.float32)
        h = jnp.maximum(h + b_ref[:, 0:h1], 0.0)

        # Layer 2.
        h = jnp.dot(h.astype(jnp.bfloat16), w2_ref[...],
                    preferred_element_type=jnp.float32)
        h = jnp.maximum(h + b_ref[:, h1:h1 + h2], 0.0)

        # Layer 3 (output padded to a full 128-lane vreg in the wrapper).
        h = jnp.dot(h.astype(jnp.bfloat16), w3_ref[...],
                    preferred_element_type=jnp.float32)
        h = jnp.maximum(h + b_ref[:, h1 + h2:h1 + h2 + h3], 0.0)

        # Head (out_features = 1): VPU multiply + XLU lane reduce instead of an
        # N=1 MXU matmul; b4 is a scalar read from SMEM. Store lane-dense as a
        # (1, TB) row so the HBM writeback uses unmasked full-lane stores.
        row = jnp.sum(h * w4_ref[...], axis=-1) + b4_ref[0, 0]      # (TB,) f32
        out_ref[...] = row[None, :]                                  # (1, TB)

    return kernel


def dvmh_efficiency_mlp(x, params, *, tile_b=4096):
    """Fused Pallas forward pass; returns (B,) like the PyTorch .squeeze()."""
    (w1, b1, s1, t1, w2, b2, s2, t2, w3, b3, s3, t3, w4, b4) = params

    # Fold eval-mode BatchNorm (per-feature scale/shift) into the preceding
    # Linear, once, outside the kernel. Parameter arrays are tiny, so this
    # wrapper-side work is negligible (unlike a pass over x).
    def fold(w, b, s, t):
        return (w * s).astype(jnp.bfloat16), (b * s + t).astype(jnp.float32)

    w1f, b1f = fold(w1, b1, s1, t1)
    w2f, b2f = fold(w2, b2, s2, t2)
    w3f, b3f = fold(w3, b3, s3, t3)

    # Zero-pad hidden3 up to a full 128-lane vreg so layer 3 and the head work
    # on unmasked vregs. Padded units contribute exactly zero.
    h1, h2, h3 = w1f.shape[1], w2f.shape[1], w3f.shape[1]
    h3p = _round_up(h3, 128)
    if h3p != h3:
        w3f = jnp.pad(w3f, ((0, 0), (0, h3p - h3)))
        b3f = jnp.pad(b3f, ((0, 0), (0, h3p - h3)))
        w4 = jnp.pad(w4, ((0, 0), (0, h3p - h3)))
    w4f = w4.astype(jnp.float32)                      # (1, h3p) head row (VPU path)
    b4f = b4.astype(jnp.float32)                      # (1, 1) scalar -> SMEM

    # One concatenated bias vector -> single tiny param DMA instead of three.
    ball = jnp.concatenate([b1f, b2f, b3f], axis=-1)  # (1, h1 + h2 + h3p)

    B, d_in = x.shape

    # Batch tiling:
    #  * big tiles amortize the ~0.35 us per-grid-step overhead,
    #  * once B > 256 keep >= 2 tiles so both v7x TensorCores get work,
    #  * 128-multiple tiles keep the lane-dense output blocks aligned,
    #  * B <= 256 -> a single full-batch tile (no partial blocks at all).
    # No wrapper-side padding of x: the last block may be partial (safe here --
    # rows are independent, padded rows are dropped by the final slice).
    if B <= 256:
        tb = max(B, 1)
    else:
        tb = min(_round_up(tile_b, 128), _round_up(pl.cdiv(B, 2), 128))
    num_tiles = pl.cdiv(B, tb)

    def param_spec(shape):
        # Constant block index: parameters are DMA'd once and stay VMEM-resident
        # across all batch tiles.
        return pl.BlockSpec(shape, lambda i: (0,) * len(shape))

    kernel = _make_kernel(h1, h2, h3p)

    out = pl.pallas_call(
        kernel,
        out_shape=jax.ShapeDtypeStruct((1, num_tiles * tb), jnp.float32),
        grid=(num_tiles,),
        in_specs=[
            pl.BlockSpec((tb, d_in), lambda i: (i, 0)),          # x batch tile
            param_spec(w1f.shape),
            param_spec(w2f.shape),
            param_spec(w3f.shape),
            param_spec(w4f.shape),
            param_spec(ball.shape),
            pl.BlockSpec(memory_space=pltpu.MemorySpace.SMEM),   # b4 scalar
        ],
        out_specs=pl.BlockSpec((1, tb), lambda i: (0, i)),       # lane-dense rows
        compiler_params=pltpu.CompilerParams(
            dimension_semantics=("parallel",),                   # 2 TCs on v7x
            vmem_limit_bytes=32 << 20,                           # big-tile headroom
        ),
    )(x, w1f, w2f, w3f, w4f, ball, b4f)

    # .squeeze() in the PyTorch module: (B,) -- drop any garbage tail rows.
    return out[0, :B]


def init_params(key, input_dim, hidden_dims=(256, 128, 64)):
    """Deterministic synthetic parameters matching the module's shapes."""
    params = []
    prev = input_dim
    keys = jax.random.split(key, len(hidden_dims) * 4 + 2)
    k_idx = 0
    for dim in hidden_dims:
        w = jax.random.normal(keys[k_idx], (prev, dim), jnp.float32) * 0.05
        b = jax.random.normal(keys[k_idx + 1], (1, dim), jnp.float32) * 0.01
        # BatchNorm1d (eval): gamma, beta, running_mean, running_var -> scale/shift
        gamma = 1.0 + 0.1 * jax.random.normal(keys[k_idx + 2], (1, dim), jnp.float32)
        beta = 0.1 * jax.random.normal(keys[k_idx + 3], (1, dim), jnp.float32)
        running_mean = jnp.zeros((1, dim), jnp.float32)
        running_var = jnp.ones((1, dim), jnp.float32)
        eps = 1e-5
        scale = gamma / jnp.sqrt(running_var + eps)
        shift = beta - running_mean * scale
        params += [w, b, scale, shift]
        prev = dim
        k_idx += 4
    # Final Linear (prev -> 1), stored as (1, prev) row vector + (1, 1) bias.
    w_out = jax.random.normal(keys[k_idx], (1, prev), jnp.float32) * 0.05
    b_out = jax.random.normal(keys[k_idx + 1], (1, 1), jnp.float32) * 0.01
    params += [w_out, b_out]
    return tuple(params)


def reference_forward(x, params):
    """Pure-JAX reference of the same eval-mode forward pass (bf16 matmuls)."""
    (w1, b1, s1, t1, w2, b2, s2, t2, w3, b3, s3, t3, w4, b4) = params

    def layer(h, w, b, s, t):
        wf = (w * s).astype(jnp.bfloat16)
        bf = b * s + t
        y = jnp.dot(h.astype(jnp.bfloat16), wf,
                    preferred_element_type=jnp.float32) + bf
        return jnp.maximum(y, 0.0)

    h = layer(x, w1, b1, s1, t1)
    h = layer(h, w2, b2, s2, t2)
    h = layer(h, w3, b3, s3, t3)
    return jnp.sum(h * w4, axis=-1) + b4[0, 0]


if __name__ == "__main__":
    key = jax.random.PRNGKey(0)
    k_params, k_x1, k_x2 = jax.random.split(key, 3)

    input_dim = 32
    params = init_params(k_params, input_dim)

    # Small batch: single full-batch tile.
    x_small = jax.random.normal(k_x1, (8, input_dim), jnp.float32)
    y_small = jax.block_until_ready(dvmh_efficiency_mlp(x_small, params))
    y_small_ref = reference_forward(x_small, params)
    assert y_small.shape == (8,), y_small.shape
    assert jnp.allclose(y_small, y_small_ref, atol=2e-3, rtol=2e-2), (
        y_small, y_small_ref)

    # Larger batch: exercises multi-tile grid + partial last block + the
    # lane-dense multi-block output path.
    x_big = jax.random.normal(k_x2, (300, input_dim), jnp.float32)
    y_big = jax.block_until_ready(dvmh_efficiency_mlp(x_big, params))
    y_big_ref = reference_forward(x_big, params)
    assert y_big.shape == (300,), y_big.shape
    assert jnp.allclose(y_big, y_big_ref, atol=2e-3, rtol=2e-2), (
        y_big, y_big_ref)

    print("KERNEL_OK")
</pallas_src>

<mosaic_0001>
module attributes {stable_mosaic.version = 11 : i64} {
  func.func @kernel(%arg0: i32, %arg1: memref<8x32xf32, #tpu.memory_space<vmem>>, %arg2: memref<32x256xbf16, #tpu.memory_space<vmem>>, %arg3: memref<256x128xbf16, #tpu.memory_space<vmem>>, %arg4: memref<128x128xbf16, #tpu.memory_space<vmem>>, %arg5: memref<1x128xf32, #tpu.memory_space<vmem>>, %arg6: memref<1x512xf32, #tpu.memory_space<vmem>>, %arg7: memref<1x1xf32, #tpu.memory_space<smem>>, %arg8: memref<1x8xf32, #tpu.memory_space<vmem>>) attributes {dimension_semantics = [#tpu.dimension_semantics<parallel>], iteration_bounds = array<i64: 1>, scalar_prefetch = 0 : i64, scratch_operands = 0 : i64, tpu.core_type = #tpu.core_type<tc>, window_params = [{transform_indices = @transform_0, window_bounds = array<i64: 8, 32>}, {pipeline_mode = #tpu.pipeline_mode<synchronous>, transform_indices = @transform_1, window_bounds = array<i64: 32, 256>}, {pipeline_mode = #tpu.pipeline_mode<synchronous>, transform_indices = @transform_2, window_bounds = array<i64: 256, 128>}, {pipeline_mode = #tpu.pipeline_mode<synchronous>, transform_indices = @transform_3, window_bounds = array<i64: 128, 128>}, {pipeline_mode = #tpu.pipeline_mode<synchronous>, transform_indices = @transform_4, window_bounds = array<i64: 1, 128>}, {pipeline_mode = #tpu.pipeline_mode<synchronous>, transform_indices = @transform_5, window_bounds = array<i64: 1, 512>}, {transform_indices = @transform_6, window_bounds = array<i64: 1, 1>}, {transform_indices = @transform_7, window_bounds = array<i64: 1, 8>}]} {
    %c0 = arith.constant 0 : index
    %c0_0 = arith.constant 0 : index
    %0 = vector.load %arg1[%c0, %c0_0] : memref<8x32xf32, #tpu.memory_space<vmem>>, vector<8x32xf32>
    %1 = arith.truncf %0 : vector<8x32xf32> to vector<8x32xbf16>
    %c0_1 = arith.constant 0 : index
    %c0_2 = arith.constant 0 : index
    %2 = vector.load %arg2[%c0_1, %c0_2] : memref<32x256xbf16, #tpu.memory_space<vmem>>, vector<32x256xbf16>
    %cst = arith.constant dense<0.000000e+00> : vector<8x256xf32>
    %3 = tpu.matmul %1, %2, %cst {dimension_numbers = #tpu.dot_dimension_numbers<[1], [0], [0], [1], [0, 0, 1, 1], [], []>} : vector<8x32xbf16>, vector<32x256xbf16>, vector<8x256xf32> -> vector<8x256xf32>
    %c0_3 = arith.constant 0 : index
    %c0_4 = arith.constant 0 : index
    %4 = vector.load %arg6[%c0_3, %c0_4] : memref<1x512xf32, #tpu.memory_space<vmem>>, vector<1x256xf32>
    %5 = vector.broadcast %4 : vector<1x256xf32> to vector<8x256xf32>
    %6 = arith.addf %3, %5 : vector<8x256xf32>
    %cst_5 = arith.constant 0.000000e+00 : f32
    %7 = vector.broadcast %cst_5 : f32 to vector<8x256xf32>
    %8 = arith.maximumf %6, %7 : vector<8x256xf32>
    %9 = arith.truncf %8 : vector<8x256xf32> to vector<8x256xbf16>
    %c0_6 = arith.constant 0 : index
    %c0_7 = arith.constant 0 : index
    %10 = vector.load %arg3[%c0_6, %c0_7] : memref<256x128xbf16, #tpu.memory_space<vmem>>, vector<256x128xbf16>
    %cst_8 = arith.constant dense<0.000000e+00> : vector<8x128xf32>
    %11 = tpu.matmul %9, %10, %cst_8 {dimension_numbers = #tpu.dot_dimension_numbers<[1], [0], [0], [1], [0, 0, 1, 1], [], []>} : vector<8x256xbf16>, vector<256x128xbf16>, vector<8x128xf32> -> vector<8x128xf32>
    %c0_9 = arith.constant 0 : index
    %c256 = arith.constant 256 : index
    %12 = vector.load %arg6[%c0_9, %c256] : memref<1x512xf32, #tpu.memory_space<vmem>>, vector<1x128xf32>
    %13 = vector.broadcast %12 : vector<1x128xf32> to vector<8x128xf32>
    %14 = arith.addf %11, %13 : vector<8x128xf32>
    %cst_10 = arith.constant 0.000000e+00 : f32
    %15 = vector.broadcast %cst_10 : f32 to vector<8x128xf32>
    %16 = arith.maximumf %14, %15 : vector<8x128xf32>
    %17 = arith.truncf %16 : vector<8x128xf32> to vector<8x128xbf16>
    %c0_11 = arith.constant 0 : index
    %c0_12 = arith.constant 0 : index
    %18 = vector.load %arg4[%c0_11, %c0_12] : memref<128x128xbf16, #tpu.memory_space<vmem>>, vector<128x128xbf16>
    %cst_13 = arith.constant dense<0.000000e+00> : vector<8x128xf32>
    %19 = tpu.matmul %17, %18, %cst_13 {dimension_numbers = #tpu.dot_dimension_numbers<[1], [0], [0], [1], [0, 0, 1, 1], [], []>} : vector<8x128xbf16>, vector<128x128xbf16>, vector<8x128xf32> -> vector<8x128xf32>
    %c0_14 = arith.constant 0 : index
    %c384 = arith.constant 384 : index
    %20 = vector.load %arg6[%c0_14, %c384] : memref<1x512xf32, #tpu.memory_space<vmem>>, vector<1x128xf32>
    %21 = vector.broadcast %20 : vector<1x128xf32> to vector<8x128xf32>
    %22 = arith.addf %19, %21 : vector<8x128xf32>
    %cst_15 = arith.constant 0.000000e+00 : f32
    %23 = vector.broadcast %cst_15 : f32 to vector<8x128xf32>
    %24 = arith.maximumf %22, %23 : vector<8x128xf32>
    %c0_16 = arith.constant 0 : index
    %c0_17 = arith.constant 0 : index
    %25 = vector.load %arg5[%c0_16, %c0_17] : memref<1x128xf32, #tpu.memory_space<vmem>>, vector<1x128xf32>
    %26 = vector.broadcast %25 : vector<1x128xf32> to vector<8x128xf32>
    %27 = arith.mulf %24, %26 : vector<8x128xf32>
    %cst_18 = arith.constant dense<0.000000e+00> : vector<8xf32>
    %28 = vector.multi_reduction <add>, %27, %cst_18 [1] : vector<8x128xf32> to vector<8xf32>
    %c0_19 = arith.constant 0 : index
    %c0_20 = arith.constant 0 : index
    %29 = memref.load %arg7[%c0_19, %c0_20] : memref<1x1xf32, #tpu.memory_space<smem>>
    %30 = vector.broadcast %29 : f32 to vector<8xf32>
    %31 = arith.addf %28, %30 : vector<8xf32>
    %32 = vector.shape_cast %31 : vector<8xf32> to vector<1x8xf32>
    %c0_21 = arith.constant 0 : index
    %c0_22 = arith.constant 0 : index
    %33 = vector.load %arg8[%c0_21, %c0_22] : memref<1x8xf32, #tpu.memory_space<vmem>>, vector<1x8xf32>
    tpu.vector_store %arg8[%c0_21, %c0_22], %32 {strides = array<i32>} : memref<1x8xf32, #tpu.memory_space<vmem>>, vector<1x8xf32>,
    return
  }
  func.func @transform_0(%arg0: i32) -> (i32, i32) {
    %c0_i32 = arith.constant 0 : i32
    %c0_i32_0 = arith.constant 0 : i32
    return %arg0, %c0_i32 : i32, i32
  }
  func.func @transform_1(%arg0: i32) -> (i32, i32) {
    %c0_i32 = arith.constant 0 : i32
    %c0_i32_0 = arith.constant 0 : i32
    %c0_i32_1 = arith.constant 0 : i32
    return %c0_i32, %c0_i32_0 : i32, i32
  }
  func.func @transform_2(%arg0: i32) -> (i32, i32) {
    %c0_i32 = arith.constant 0 : i32
    %c0_i32_0 = arith.constant 0 : i32
    %c0_i32_1 = arith.constant 0 : i32
    return %c0_i32, %c0_i32_0 : i32, i32
  }
  func.func @transform_3(%arg0: i32) -> (i32, i32) {
    %c0_i32 = arith.constant 0 : i32
    %c0_i32_0 = arith.constant 0 : i32
    %c0_i32_1 = arith.constant 0 : i32
    return %c0_i32, %c0_i32_0 : i32, i32
  }
  func.func @transform_4(%arg0: i32) -> (i32, i32) {
    %c0_i32 = arith.constant 0 : i32
    %c0_i32_0 = arith.constant 0 : i32
    %c0_i32_1 = arith.constant 0 : i32
    return %c0_i32, %c0_i32_0 : i32, i32
  }
  func.func @transform_5(%arg0: i32) -> (i32, i32) {
    %c0_i32 = arith.constant 0 : i32
    %c0_i32_0 = arith.constant 0 : i32
    %c0_i32_1 = arith.constant 0 : i32
    return %c0_i32, %c0_i32_0 : i32, i32
  }
  func.func @transform_6(%arg0: i32) -> (i32, i32) {
    %c0_i32 = arith.constant 0 : i32
    %c0_i32_0 = arith.constant 0 : i32
    %c0_i32_1 = arith.constant 0 : i32
    return %c0_i32, %c0_i32_0 : i32, i32
  }
  func.func @transform_7(%arg0: i32) -> (i32, i32) {
    %c0_i32 = arith.constant 0 : i32
    %c0_i32_0 = arith.constant 0 : i32
    return %c0_i32, %arg0 : i32, i32
  }
}

</mosaic_0001>

<llo_original>
// kernel: tpu_custom_call.1
$region0: #{tpu_custom_call.1}
  #allocation0 [shape = 'u32[]', space=smem, size = 0x4, offset = 0x4, fixed_abs, tag = 'smem constant byte address 0x4 - core index']
  #allocation1 [shape = 'u32[144,128]{1,0:T(1,128)}', space=vmem, size = 0x12000, scoped, tag = 'internal scratch']
  #allocation2 [shape = 'f32[1,1]{1,0:T(1,128)S(6)}', space=smem, size = 0x200, scoped, tag = 'scoped memory for tpu_custom_call.1']
  %s0 = inlined_call_operand.hbm [shape: f32[8,32], index: 0, kind: input, shape index: {}]
  %s1 = inlined_call_operand.hbm [shape: bf16[32,256], index: 1, kind: input, shape index: {}]
  %s2 = inlined_call_operand.hbm [shape: bf16[256,128], index: 2, kind: input, shape index: {}]
  %s3 = inlined_call_operand.hbm [shape: bf16[128,128], index: 3, kind: input, shape index: {}]
  %s4 = inlined_call_operand.vmem [shape: f32[1,128], index: 4, kind: input, shape index: {}]
  %s5 = inlined_call_operand.vmem [shape: f32[1,512], index: 5, kind: input, shape index: {}]
  %s6 = inlined_call_operand.<no memory space> [shape: f32[1,1], index: 6, kind: input, shape index: {}]
  %s7 = inlined_call_operand.hbm [shape: f32[1,8], index: 7, kind: output, shape index: {}]
  %s8 = sld [smem:[#allocation0]]
  $region54: #{tpu_custom_call.1} parent=0
    _
  %s10 = ssub.s32 1, %s8
  %s11 = scalar_select 0, %s10, %s8
  %12 = sst [smem:[#allocation2]] %s6
  $region1: #{tpu_custom_call.1} parent=0
    #allocation3 [shape = 'u8[4096]{0}', space=vmem, size = 0x1000, scoped, tag = 'input window, operand 0, single buffered']
    #allocation4 [shape = 's32[1]{0}', space=sflag, size = 0x4, scoped, tag = 'scoped memory for tpu_custom_call.1']
    #allocation5 [shape = 's32[1]{0}', space=sflag, size = 0x4, scoped, tag = 'scoped memory for tpu_custom_call.1']
    #allocation6 [shape = 'u8[16384]{0}', space=vmem, size = 0x4000, scoped, tag = 'input window, operand 1, single buffered']
    #allocation7 [shape = 's32[1]{0}', space=sflag, size = 0x4, scoped, tag = 'scoped memory for tpu_custom_call.1']
    #allocation8 [shape = 'u8[65536]{0}', space=vmem, size = 0x10000, scoped, tag = 'input window, operand 2, single buffered']
    #allocation9 [shape = 'u8[32768]{0}', space=vmem, size = 0x8000, scoped, tag = 'input window, operand 3, single buffered']
    #allocation10 [shape = 's32[1]{0}', space=sflag, size = 0x4, scoped, tag = 'scoped memory for tpu_custom_call.1']
    #allocation11 [shape = 'u8[512]{0}', space=vmem, size = 0x400, scoped, tag = 'output window, operand 0, single buffered']
    %13 = vsyncpa [#allocation4], 0
    %14 = vsyncpa [#allocation7], 0
    %15 = vsyncpa [#allocation10], 0
    %16 = vsyncpa [#allocation5], 0
    // Predicated region
    $region2: #{tpu_custom_call.1} parent=1 // pred_check
      _
    $region3: #{tpu_custom_call.1} parent=1 // pred_check_branch
      %18 = sbr.rel (0) target = $region5
    $region4: #{tpu_custom_call.1} parent=1 // pred_region
      %s20 = ssub.s32 128, 128
      %21 = vsyncadd [#allocation4], %s20
      %s23 = sshll.u32 [#allocation3], 4
      %s24 = int_to_ptr.vmem [resolvable:$true] %s23
      %26 = dma.hbm_to_vmem [thread:$0]  %s0, 128, %s24, [#allocation4]
    $region5: #{tpu_custom_call.1} parent=1 // pred_fallthru
      _
    // Predicated region
    $region6: #{tpu_custom_call.1} parent=1 // pred_check
      _
    $region7: #{tpu_custom_call.1} parent=1 // pred_check_branch
      %28 = sbr.rel (0) target = $region9
    $region8: #{tpu_custom_call.1} parent=1 // pred_region
      %s30 = ssub.s32 512, 512
      %31 = vsyncadd [#allocation7], %s30
      %s32 = sshll.u32 [#allocation6], 4
      %s33 = int_to_ptr.vmem [resolvable:$true] %s32
      %38 = dma.hbm_to_vmem [thread:$0]  %s1, 512, %s33, [#allocation7], 128, 128, 8
    $region9: #{tpu_custom_call.1} parent=1 // pred_fallthru
      _
    // Predicated region
    $region10: #{tpu_custom_call.1} parent=1 // pred_check
      _
    $region11: #{tpu_custom_call.1} parent=1 // pred_check_branch
      %40 = sbr.rel (0) target = $region13
    $region12: #{tpu_custom_call.1} parent=1 // pred_region
      %s42 = ssub.s32 2048, 2048
      %43 = vsyncadd [#allocation7], %s42
      %s44 = sshll.u32 [#allocation8], 4
      %s45 = int_to_ptr.vmem [resolvable:$true] %s44
      %50 = dma.hbm_to_vmem [thread:$0]  %s2, 2048, %s45, [#allocation7], 64, 64, 4
    $region13: #{tpu_custom_call.1} parent=1 // pred_fallthru
      _
    // Predicated region
    $region14: #{tpu_custom_call.1} parent=1 // pred_check
      _
    $region15: #{tpu_custom_call.1} parent=1 // pred_check_branch
      %52 = sbr.rel (0) target = $region17
    $region16: #{tpu_custom_call.1} parent=1 // pred_region
      %s54 = ssub.s32 1024, 1024
      %55 = vsyncadd [#allocation10], %s54
      %s56 = sshll.u32 [#allocation9], 4
      %s57 = int_to_ptr.vmem [resolvable:$true] %s56
      %62 = dma.hbm_to_vmem [thread:$0]  %s3, 1024, %s57, [#allocation10], 64, 64, 4
    $region17: #{tpu_custom_call.1} parent=1 // pred_fallthru
      _
    // Predicated region
    $region18: #{tpu_custom_call.1} parent=1 // pred_check
      _
    $region19: #{tpu_custom_call.1} parent=1 // pred_check_branch
      %64 = sbr.rel (0) target = $region21
    $region20: #{tpu_custom_call.1} parent=1 // pred_region
      _
    $region21: #{tpu_custom_call.1} parent=1 // pred_fallthru
      _
    // Predicated region
    $region22: #{tpu_custom_call.1} parent=1 // pred_check
      _
    $region23: #{tpu_custom_call.1} parent=1 // pred_check_branch
      %66 = sbr.rel (0) target = $region25
    $region24: #{tpu_custom_call.1} parent=1 // pred_region
      _
    $region25: #{tpu_custom_call.1} parent=1 // pred_fallthru
      _
    // Predicated region
    $region26: #{tpu_custom_call.1} parent=1 // pred_check
      _
    $region27: #{tpu_custom_call.1} parent=1 // pred_check_branch
      %68 = sbr.rel (0) target = $region29
    $region28: #{tpu_custom_call.1} parent=1 // pred_region
      _
    $region29: #{tpu_custom_call.1} parent=1 // pred_fallthru
      _
    // Predicated region
    $region30: #{tpu_custom_call.1} parent=1 // pred_check
      _
    $region31: #{tpu_custom_call.1} parent=1 // pred_check_branch
      %70 = sbr.rel (0) target = $region33
    $region32: #{tpu_custom_call.1} parent=1 // pred_region
      %71 = dma.done [#allocation4], 128
    $region33: #{tpu_custom_call.1} parent=1 // pred_fallthru
      _
    // Predicated region
    $region34: #{tpu_custom_call.1} parent=1 // pred_check
      _
    $region35: #{tpu_custom_call.1} parent=1 // pred_check_branch
      %73 = sbr.rel (0) target = $region37
    $region36: #{tpu_custom_call.1} parent=1 // pred_region
      %74 = dma.done [#allocation7], 512
    $region37: #{tpu_custom_call.1} parent=1 // pred_fallthru
      _
    // Predicated region
    $region38: #{tpu_custom_call.1} parent=1 // pred_check
      _
    $region39: #{tpu_custom_call.1} parent=1 // pred_check_branch
      %76 = sbr.rel (0) target = $region41
    $region40: #{tpu_custom_call.1} parent=1 // pred_region
      %77 = dma.done [#allocation7], 2048
    $region41: #{tpu_custom_call.1} parent=1 // pred_fallthru
      _
    // Predicated region
    $region42: #{tpu_custom_call.1} parent=1 // pred_check
      _
    $region43: #{tpu_custom_call.1} parent=1 // pred_check_branch
      %79 = sbr.rel (0) target = $region45
    $region44: #{tpu_custom_call.1} parent=1 // pred_region
      %80 = dma.done [#allocation10], 1024
    $region45: #{tpu_custom_call.1} parent=1 // pred_fallthru
      _
    %v82 = vld [vmem:[#allocation3] sm:$0xff]
    %v83 = vpack.c.bf16 %v82, %v82
    %v84 = vld [vmem:[#allocation6] sm:$0xff]
    %v85 = vld [vmem:[#allocation6 + $0x8] sm:$0xff]
    %v86 = vld [vmem:[#allocation6 + $0x10] sm:$0xff]
    %v87 = vld [vmem:[#allocation6 + $0x18] sm:$0xff]
    %v88 = vld [vmem:[%s5] sm:$0x3]
    %v90 = vlaneseq
    %v91 = vshrl.u32 %v90, 7
    %v92 = vsub.s32 0, %v91
    %v93 = vrot.slane %v88, %v92
    %v94 = vlaneseq
    %v95 = vshrl.u32 %v94, 7
    %v96 = vsub.s32 1, %v95
    %v97 = vrot.slane %v88, %v96
    %v104 = vunpack.c.l.b16 %v84
    %v105 = vunpack.c.h.b16 %v84
    %v106 = vunpack.c.l.b16 %v85
    %v107 = vunpack.c.h.b16 %v85
    %v108 = vunpack.c.l.b16 %v86
    %v109 = vunpack.c.h.b16 %v86
    %v110 = vunpack.c.l.b16 %v87
    %v111 = vunpack.c.h.b16 %v87
    %v112 = vpack.c.b16 %v106, %v104
    %v113 = vpack.c.b16 %v107, %v105
    %v114 = vpack.c.b16 %v110, %v108
    %v115 = vpack.c.b16 %v111, %v109
    %vm120 = vcmask 261120
    %v122 = vsel %vm120, %v83, 0
    %124 = vmatprep.subr.bf16.mxu0 %v113
    %125 = vmatpush1.bf16.msra.mxu0 %v112
    %126 = vmatprep.subr.bf16.mxu0 %v115
    %127 = vmatpush1.bf16.msra.mxu0 %v114
    %128 = vmatprep.subr.bf16.mxu0 0
    %129 = vmatpush1.bf16.msra.mxu0 0
    %130 = vmatprep.subr.bf16.mxu0 0
    %131 = vmatpush1.bf16.msra.mxu0 0
    %132 = vmatprep.subr.bf16.mxu0 0
    %133 = vmatpush1.bf16.msra.mxu0 0
    %134 = vmatprep.subr.bf16.mxu0 0
    %135 = vmatpush1.bf16.msra.mxu0 0
    %136 = vmatprep.subr.bf16.mxu0 0
    %137 = vmatpush1.bf16.msra.mxu0 0
    %138 = vmatprep.subr.bf16.mxu0 0
    %139 = vmatpush1.bf16.msra.mxu0 0
    %140 = vmatprep.subr.bf16.mxu0 0
    %141 = vmatpush1.bf16.msra.mxu0 0
    %142 = vmatprep.subr.bf16.mxu0 0
    %143 = vmatpush1.bf16.msra.mxu0 0
    %144 = vmatprep.subr.bf16.mxu0 0
    %145 = vmatpush1.bf16.msra.mxu0 0
    %146 = vmatprep.subr.bf16.mxu0 0
    %147 = vmatpush1.bf16.msra.mxu0 0
    %148 = vmatprep.subr.bf16.mxu0 0
    %149 = vmatpush1.bf16.msra.mxu0 0
    %150 = vmatprep.subr.bf16.mxu0 0
    %151 = vmatpush1.bf16.msra.mxu0 0
    %152 = vmatprep.subr.bf16.mxu0 0
    %153 = vmatpush1.bf16.msra.mxu0 0
    %154 = vmatprep.subr.bf16.mxu0 0
    %155 = vmatpush1.bf16.msra.mxu0 0
    %156 = vmatprep.mubr.bf16.mxu0 0
    %157 = vmatmul.mubr.bf16.gmra.mrb[0].mxu0 %v122
    %v158 = vpop.f32.mrb[0].mxu0
    %v159 = vadd.f32 %v93, %v158
    %v160 = vpop.f32.mrb[0].mxu0
    %v161 = vadd.f32 %v97, %v160
    %v162 = vpop.f32.mrb[0].mxu0
    %v163 = vpop.f32.mrb[0].mxu0
    %164 = vdwg.mxu0
    %v165 = vmax.f32 %v159, 0.0
    %v166 = vmax.f32 %v161, 0.0
    %v167 = vpack.c.bf16 %v165, %v165
    %v168 = vpack.c.bf16 %v166, %v166
    %v169 = vld [vmem:[#allocation8] sm:$0xf]
    %v170 = vld [vmem:[#allocation8 + $0x4] sm:$0xf]
    %v171 = vld [vmem:[#allocation8 + $0x8] sm:$0xf]
    %v172 = vld [vmem:[#allocation8 + $0xc] sm:$0xf]
    %v173 = vld [vmem:[#allocation8 + $0x10] sm:$0xf]
    %v174 = vld [vmem:[#allocation8 + $0x14] sm:$0xf]
    %v175 = vld [vmem:[#allocation8 + $0x18] sm:$0xf]
    %v176 = vld [vmem:[#allocation8 + $0x1c] sm:$0xf]
    %v177 = vld [vmem:[#allocation8 + $0x20] sm:$0xf]
    %v178 = vld [vmem:[#allocation8 + $0x24] sm:$0xf]
    %v179 = vld [vmem:[#allocation8 + $0x28] sm:$0xf]
    %v180 = vld [vmem:[#allocation8 + $0x2c] sm:$0xf]
    %v181 = vld [vmem:[#allocation8 + $0x30] sm:$0xf]
    %v182 = vld [vmem:[#allocation8 + $0x34] sm:$0xf]
    %v183 = vld [vmem:[#allocation8 + $0x38] sm:$0xf]
    %v184 = vld [vmem:[#allocation8 + $0x3c] sm:$0xf]
    %v185 = vld [vmem:[#allocation8 + $0x40] sm:$0xf]
    %v186 = vld [vmem:[#allocation8 + $0x44] sm:$0xf]
    %v187 = vld [vmem:[#allocation8 + $0x48] sm:$0xf]
    %v188 = vld [vmem:[#allocation8 + $0x4c] sm:$0xf]
    %v189 = vld [vmem:[#allocation8 + $0x50] sm:$0xf]
    %v190 = vld [vmem:[#allocation8 + $0x54] sm:$0xf]
    %v191 = vld [vmem:[#allocation8 + $0x58] sm:$0xf]
    %v192 = vld [vmem:[#allocation8 + $0x5c] sm:$0xf]
    %v193 = vld [vmem:[#allocation8 + $0x60] sm:$0xf]
    %v194 = vld [vmem:[#allocation8 + $0x64] sm:$0xf]
    %v195 = vld [vmem:[#allocation8 + $0x68] sm:$0xf]
    %v196 = vld [vmem:[#allocation8 + $0x6c] sm:$0xf]
    %v197 = vld [vmem:[#allocation8 + $0x70] sm:$0xf]
    %v198 = vld [vmem:[#allocation8 + $0x74] sm:$0xf]
    %v199 = vld [vmem:[#allocation8 + $0x78] sm:$0xf]
    %v200 = vld [vmem:[#allocation8 + $0x7c] sm:$0xf]
    %v201 = vld [vmem:[%s5 + $0x2] sm:$0x1]
    %v203 = vlaneseq
    %v204 = vshrl.u32 %v203, 7
    %v205 = vsub.s32 0, %v204
    %v206 = vrot.slane %v201, %v205
    %v240 = vunpack.c.l.b16 %v169
    %v241 = vunpack.c.l.b16 %v170
    %v242 = vunpack.c.l.b16 %v171
    %v243 = vunpack.c.l.b16 %v172
    %v244 = vunpack.c.l.b16 %v173
    %v245 = vunpack.c.l.b16 %v174
    %v246 = vunpack.c.l.b16 %v175
    %v247 = vunpack.c.l.b16 %v176
    %v248 = vunpack.c.l.b16 %v177
    %v249 = vunpack.c.l.b16 %v178
    %v250 = vunpack.c.l.b16 %v179
    %v251 = vunpack.c.l.b16 %v180
    %v252 = vunpack.c.l.b16 %v181
    %v253 = vunpack.c.l.b16 %v182
    %v254 = vunpack.c.l.b16 %v183
    %v255 = vunpack.c.l.b16 %v184
    %v256 = vunpack.c.l.b16 %v185
    %v257 = vunpack.c.l.b16 %v186
    %v258 = vunpack.c.l.b16 %v187
    %v259 = vunpack.c.l.b16 %v188
    %v260 = vunpack.c.l.b16 %v189
    %v261 = vunpack.c.l.b16 %v190
    %v262 = vunpack.c.l.b16 %v191
    %v263 = vunpack.c.l.b16 %v192
    %v264 = vunpack.c.l.b16 %v193
    %v265 = vunpack.c.l.b16 %v194
    %v266 = vunpack.c.l.b16 %v195
    %v267 = vunpack.c.l.b16 %v196
    %v268 = vunpack.c.l.b16 %v197
    %v269 = vunpack.c.l.b16 %v198
    %v270 = vunpack.c.l.b16 %v199
    %v271 = vunpack.c.l.b16 %v200
    %v272 = vpack.c.b16 %v241, %v240
    %v273 = vpack.c.b16 %v243, %v242
    %v274 = vpack.c.b16 %v245, %v244
    %v275 = vpack.c.b16 %v247, %v246
    %v276 = vpack.c.b16 %v249, %v248
    %v277 = vpack.c.b16 %v251, %v250
    %v278 = vpack.c.b16 %v253, %v252
    %v279 = vpack.c.b16 %v255, %v254
    %v280 = vpack.c.b16 %v257, %v256
    %v281 = vpack.c.b16 %v259, %v258
    %v282 = vpack.c.b16 %v261, %v260
    %v283 = vpack.c.b16 %v263, %v262
    %v284 = vpack.c.b16 %v265, %v264
    %v285 = vpack.c.b16 %v267, %v266
    %v286 = vpack.c.b16 %v269, %v268
    %v287 = vpack.c.b16 %v271, %v270
    %304 = vmatprep.subr.bf16.mxu0 0
    %305 = vmatpush1.bf16.msra.mxu0 %v272
    %306 = vmatprep.subr.bf16.mxu0 0
    %307 = vmatpush1.bf16.msra.mxu0 %v273
    %308 = vmatprep.subr.bf16.mxu0 0
    %309 = vmatpush1.bf16.msra.mxu0 %v274
    %310 = vmatprep.subr.bf16.mxu0 0
    %311 = vmatpush1.bf16.msra.mxu0 %v275
    %312 = vmatprep.subr.bf16.mxu0 0
    %313 = vmatpush1.bf16.msra.mxu0 %v276
    %314 = vmatprep.subr.bf16.mxu0 0
    %315 = vmatpush1.bf16.msra.mxu0 %v277
    %316 = vmatprep.subr.bf16.mxu0 0
    %317 = vmatpush1.bf16.msra.mxu0 %v278
    %318 = vmatprep.subr.bf16.mxu0 0
    %319 = vmatpush1.bf16.msra.mxu0 %v279
    %320 = vmatprep.subr.bf16.mxu0 0
    %321 = vmatpush1.bf16.msra.mxu0 %v280
    %322 = vmatprep.subr.bf16.mxu0 0
    %323 = vmatpush1.bf16.msra.mxu0 %v281
    %324 = vmatprep.subr.bf16.mxu0 0
    %325 = vmatpush1.bf16.msra.mxu0 %v282
    %326 = vmatprep.subr.bf16.mxu0 0
    %327 = vmatpush1.bf16.msra.mxu0 %v283
    %328 = vmatprep.subr.bf16.mxu0 0
    %329 = vmatpush1.bf16.msra.mxu0 %v284
    %330 = vmatprep.subr.bf16.mxu0 0
    %331 = vmatpush1.bf16.msra.mxu0 %v285
    %332 = vmatprep.subr.bf16.mxu0 0
    %333 = vmatpush1.bf16.msra.mxu0 %v286
    %334 = vmatprep.subr.bf16.mxu0 0
    %335 = vmatpush1.bf16.msra.mxu0 %v287
    %336 = vmatprep.mubr.bf16.mxu0 %v168
    %337 = vmatmul.mubr.bf16.gmra.mrb[0].mxu0 %v167
    %v338 = vpop.f32.mrb[0].mxu0
    %v339 = vadd.f32 %v206, %v338
    %v340 = vpop.f32.mrb[0].mxu0
    %v341 = vpop.f32.mrb[0].mxu0
    %v342 = vpop.f32.mrb[0].mxu0
    %343 = vdwg.mxu0
    %v344 = vmax.f32 %v339, 0.0
    %v345 = vpack.c.bf16 %v344, %v344
    %v346 = vld [vmem:[#allocation9] sm:$0xf]
    %v347 = vld [vmem:[#allocation9 + $0x4] sm:$0xf]
    %v348 = vld [vmem:[#allocation9 + $0x8] sm:$0xf]
    %v349 = vld [vmem:[#allocation9 + $0xc] sm:$0xf]
    %v350 = vld [vmem:[#allocation9 + $0x10] sm:$0xf]
    %v351 = vld [vmem:[#allocation9 + $0x14] sm:$0xf]
    %v352 = vld [vmem:[#allocation9 + $0x18] sm:$0xf]
    %v353 = vld [vmem:[#allocation9 + $0x1c] sm:$0xf]
    %v354 = vld [vmem:[#allocation9 + $0x20] sm:$0xf]
    %v355 = vld [vmem:[#allocation9 + $0x24] sm:$0xf]
    %v356 = vld [vmem:[#allocation9 + $0x28] sm:$0xf]
    %v357 = vld [vmem:[#allocation9 + $0x2c] sm:$0xf]
    %v358 = vld [vmem:[#allocation9 + $0x30] sm:$0xf]
    %v359 = vld [vmem:[#allocation9 + $0x34] sm:$0xf]
    %v360 = vld [vmem:[#allocation9 + $0x38] sm:$0xf]
    %v361 = vld [vmem:[#allocation9 + $0x3c] sm:$0xf]
    %v362 = vld [vmem:[%s5 + $0x3] sm:$0x1]
    %v364 = vlaneseq
    %v365 = vshrl.u32 %v364, 7
    %v366 = vsub.s32 0, %v365
    %v367 = vrot.slane %v362, %v366
    %v385 = vunpack.c.l.b16 %v346
    %v386 = vunpack.c.l.b16 %v347
    %v387 = vunpack.c.l.b16 %v348
    %v388 = vunpack.c.l.b16 %v349
    %v389 = vunpack.c.l.b16 %v350
    %v390 = vunpack.c.l.b16 %v351
    %v391 = vunpack.c.l.b16 %v352
    %v392 = vunpack.c.l.b16 %v353
    %v393 = vunpack.c.l.b16 %v354
    %v394 = vunpack.c.l.b16 %v355
    %v395 = vunpack.c.l.b16 %v356
    %v396 = vunpack.c.l.b16 %v357
    %v397 = vunpack.c.l.b16 %v358
    %v398 = vunpack.c.l.b16 %v359
    %v399 = vunpack.c.l.b16 %v360
    %v400 = vunpack.c.l.b16 %v361
    %v401 = vpack.c.b16 %v386, %v385
    %v402 = vpack.c.b16 %v388, %v387
    %v403 = vpack.c.b16 %v390, %v389
    %v404 = vpack.c.b16 %v392, %v391
    %v405 = vpack.c.b16 %v394, %v393
    %v406 = vpack.c.b16 %v396, %v395
    %v407 = vpack.c.b16 %v398, %v397
    %v408 = vpack.c.b16 %v400, %v399
    %417 = vmatprep.subr.bf16.mxu0 0
    %418 = vmatpush1.bf16.msra.mxu0 %v401
    %419 = vmatprep.subr.bf16.mxu0 0
    %420 = vmatpush1.bf16.msra.mxu0 %v402
    %421 = vmatprep.subr.bf16.mxu0 0
    %422 = vmatpush1.bf16.msra.mxu0 %v403
    %423 = vmatprep.subr.bf16.mxu0 0
    %424 = vmatpush1.bf16.msra.mxu0 %v404
    %425 = vmatprep.subr.bf16.mxu0 0
    %426 = vmatpush1.bf16.msra.mxu0 %v405
    %427 = vmatprep.subr.bf16.mxu0 0
    %428 = vmatpush1.bf16.msra.mxu0 %v406
    %429 = vmatprep.subr.bf16.mxu0 0
    %430 = vmatpush1.bf16.msra.mxu0 %v407
    %431 = vmatprep.subr.bf16.mxu0 0
    %432 = vmatpush1.bf16.msra.mxu0 %v408
    %433 = vmatprep.subr.bf16.mxu0 0
    %434 = vmatpush1.bf16.msra.mxu0 0
    %435 = vmatprep.subr.bf16.mxu0 0
    %436 = vmatpush1.bf16.msra.mxu0 0
    %437 = vmatprep.subr.bf16.mxu0 0
    %438 = vmatpush1.bf16.msra.mxu0 0
    %439 = vmatprep.subr.bf16.mxu0 0
    %440 = vmatpush1.bf16.msra.mxu0 0
    %441 = vmatprep.subr.bf16.mxu0 0
    %442 = vmatpush1.bf16.msra.mxu0 0
    %443 = vmatprep.subr.bf16.mxu0 0
    %444 = vmatpush1.bf16.msra.mxu0 0
    %445 = vmatprep.subr.bf16.mxu0 0
    %446 = vmatpush1.bf16.msra.mxu0 0
    %447 = vmatprep.subr.bf16.mxu0 0
    %448 = vmatpush1.bf16.msra.mxu0 0
    %449 = vmatprep.mubr.bf16.mxu0 0
    %450 = vmatmul.mubr.bf16.gmra.mrb[0].mxu0 %v345
    %v451 = vpop.f32.mrb[0].mxu0
    %v452 = vadd.f32 %v367, %v451
    %v453 = vpop.f32.mrb[0].mxu0
    %v454 = vpop.f32.mrb[0].mxu0
    %v455 = vpop.f32.mrb[0].mxu0
    %456 = vdwg.mxu0
    %v457 = vmax.f32 %v452, 0.0
    %v458 = vld [vmem:[%s4] sm:$0x1]
    %v460 = vlaneseq
    %v461 = vshrl.u32 %v460, 7
    %v462 = vsub.s32 0, %v461
    %v463 = vrot.slane %v458, %v462
    %v465 = vmul.f32 %v457, %v463
    %466 = vadd.xlane.f32.xlu0 %v465
    %v467 = vpop.xlane.xlu0 %466
    %s468 = sld [smem:[#allocation2]]
    %v469 = vstv %s468
    %v470 = vadd.f32 %v467, %v469
    %v472 = vlaneseq
    %v473 = vand.u32 %v472, 127
    %v474 = vlaneseq
    %v475 = vshrl.u32 %v474, 7
    %v476 = vsub.s32 %v473, %v475
    %v477 = vrot.slane %v470, %v476
    %vm479 = vcmask 57344
    %480 = vst.msk [vmem:[#allocation11] sm:$0x1] %vm479, %v477
    // Predicated region
    $region46: #{tpu_custom_call.1} parent=1 // pred_check
      _
    $region47: #{tpu_custom_call.1} parent=1 // pred_check_branch
      %482 = sbr.rel (0) target = $region49
    $region48: #{tpu_custom_call.1} parent=1 // pred_region
      %s484 = ssub.s32 16, 16
      %485 = vsyncadd [#allocation5], %s484
      %s487 = sshll.u32 [#allocation11], 4
      %s488 = int_to_ptr.vmem [resolvable:$true] %s487
      %490 = dma.vmem_to_hbm [thread:$0]  %s488, 16, %s7, [#allocation5]
    $region49: #{tpu_custom_call.1} parent=1 // pred_fallthru
      _
    // Predicated region
    $region50: #{tpu_custom_call.1} parent=1 // pred_check
      _
    $region51: #{tpu_custom_call.1} parent=1 // pred_check_branch
      %492 = sbr.rel (0) target = $region53
    $region52: #{tpu_custom_call.1} parent=1 // pred_region
      %493 = dma.done [#allocation5], 16
    $region53: #{tpu_custom_call.1} parent=1 // pred_fallthru
      _
    %494 = vsyncpa [#allocation4], 1
    %495 = vsyncpa [#allocation7], 1
    %496 = vsyncpa [#allocation10], 1
    %497 = vsyncpa [#allocation5], 1

</llo_original>
